<compile_context>
chip_gen: v5e
topology: v5e:2x2
jax: 0.10.0
libtpu: 0.0.40
codegen_flags: <defaults>
</compile_context>

<pallas_src>
import functools

import jax
import jax.numpy as jnp
from jax.experimental import pallas as pl
from jax.experimental.pallas import tpu as pltpu

KERNEL_SIZES = (3, 5, 7)
BN_EPS = 1e-5
MAX_PAD = max(KERNEL_SIZES) // 2          # 3
N_TAPS = 2 * MAX_PAD + 1                  # 7


def _ms_conv_kernel(x_ref, w_ref, b_ref, o_ref, xp_ref, *, length, batch_block):
    """One grid step = one block of `batch_block` samples.

    x_ref  : (B, C_in, L)              f32 input block (natural NCL layout)
    w_ref  : (3*C_out, 7*C_in)         bf16 combined BN-folded weights
    b_ref  : (3*C_out, 1)              f32 combined BN-folded bias
    o_ref  : (B, 3*C_out, L)           f32 output block
    xp_ref : (B, C_in, L + 2*MAX_PAD)  bf16 scratch (padded input)
    """
    L, P, B = length, MAX_PAD, batch_block
    c_in = x_ref.shape[1]

    # In-kernel halo: zero the pad columns, drop the (bf16-cast) input block in
    # the centre.  Replaces a wrapper-side jnp.pad that would re-read/re-write
    # the whole activation tensor in HBM before the kernel even runs.
    xp_ref[:, :, :P] = jnp.zeros((B, c_in, P), xp_ref.dtype)
    xp_ref[:, :, P + L:] = jnp.zeros((B, c_in, P), xp_ref.dtype)
    xp_ref[:, :, P:P + L] = x_ref[...].astype(xp_ref.dtype)

    w = w_ref[...]        # (3*C_out, 7*C_in) bf16
    bias = b_ref[...]     # (3*C_out, 1)      f32

    for b in range(B):    # static unroll; B is a trace-time constant
        xb = xp_ref[b]    # (C_in, L + 2P) bf16
        # im2col: rows = tap-major (j*C_in + c), cols = output positions.
        # 7 shifted slices shared by all three branches (down from 15).
        cols = jnp.concatenate([xb[:, j:j + L] for j in range(N_TAPS)], axis=0)
        # One MXU matmul produces all three branches for this sample.
        y = jnp.dot(w, cols, preferred_element_type=jnp.float32)   # (3*C_out, L)
        y = jnp.maximum(y + bias, 0.0)                              # bias + ReLU
        o_ref[b] = y.astype(o_ref.dtype)


def _fold_params(params, c_in):
    """Fold eval-mode BN into the convs and merge the three branches into one
    (3*C_out, 7*C_in) bf16 weight (tap-major columns) + one (3*C_out, 1) bias."""
    c_out = params["w"][0].shape[0]
    n_br = len(KERNEL_SIZES)
    w_all = jnp.zeros((n_br * c_out, N_TAPS * c_in), jnp.float32)
    b_all = jnp.zeros((n_br * c_out,), jnp.float32)
    for i, k in enumerate(KERNEL_SIZES):
        w, b = params["w"][i], params["b"][i]
        gamma, beta = params["gamma"][i], params["beta"][i]
        mean, var = params["mean"][i], params["var"][i]
        scale = gamma / jnp.sqrt(var + BN_EPS)                    # (C_out,)
        wf = w * scale[:, None, None]                             # (C_out, C_in, k)
        bf = (b - mean) * scale + beta                            # (C_out,)
        # Branch-k tap t lands at combined tap index j = (MAX_PAD - k//2) + t.
        off = MAX_PAD - k // 2
        wt = jnp.transpose(wf, (0, 2, 1)).reshape(c_out, k * c_in)  # [co, t*C_in+c]
        w_all = w_all.at[i * c_out:(i + 1) * c_out,
                         off * c_in:(off + k) * c_in].set(wt)
        b_all = b_all.at[i * c_out:(i + 1) * c_out].set(bf)
    return w_all.astype(jnp.bfloat16), b_all[:, None]


def _pick_batch_block(n, length):
    """Batch elements per grid step: target ~1024 output columns of work per step
    (amortise per-step pipeline overhead, bigger DMAs), keep >=2 grid steps when
    blocks stay wide (feeds both v7x TensorCores), cap the in-kernel unroll."""
    b = max(1, min(n, 1024 // max(length, 1), 32))
    if b == n and n > 1 and (n // 2) * length >= 1024:
        b = n // 2
    while n % b:
        b -= 1
    return b


def multi_scale_conv1d(x, params):
    """x: (N, C_in, L) float32.  Returns (N, 3*C_out, L) float32 (module layout)."""
    n, c_in, length = x.shape
    c_out = params["w"][0].shape[0]
    n_ch_out = len(KERNEL_SIZES) * c_out

    w_all, b_all = _fold_params(params, c_in)
    bb = _pick_batch_block(n, length)
    grid = (n // bb,)

    kernel = functools.partial(_ms_conv_kernel, length=length, batch_block=bb)

    # VMEM budget: double-buffered in/out blocks + weights + scratch (+ slack),
    # clamped to 64 MiB so the same setting is also valid on v7x (64 MiB physical).
    block_bytes = bb * c_in * length * 4 + bb * n_ch_out * length * 4
    fixed_bytes = (w_all.size * 2 + b_all.size * 4
                   + bb * c_in * (length + 2 * MAX_PAD) * 2)
    vmem_limit = int(min(64 * 1024 * 1024,
                         max(32 * 1024 * 1024, 4 * (2 * block_bytes + fixed_bytes))))

    grid_spec = pltpu.PrefetchScalarGridSpec(
        num_scalar_prefetch=0,
        grid=grid,
        in_specs=[
            pl.BlockSpec((bb, c_in, length), lambda i: (i, 0, 0)),
            pl.BlockSpec((n_ch_out, N_TAPS * c_in), lambda i: (0, 0)),
            pl.BlockSpec((n_ch_out, 1), lambda i: (0, 0)),
        ],
        out_specs=pl.BlockSpec((bb, n_ch_out, length), lambda i: (i, 0, 0)),
        scratch_shapes=[
            pltpu.VMEM((bb, c_in, length + 2 * MAX_PAD), jnp.bfloat16),
        ],
    )

    return pl.pallas_call(
        kernel,
        out_shape=jax.ShapeDtypeStruct((n, n_ch_out, length), jnp.float32),
        grid_spec=grid_spec,
        compiler_params=pltpu.CompilerParams(
            dimension_semantics=("parallel",),
            vmem_limit_bytes=vmem_limit,
        ),
    )(x, w_all, b_all)


def _reference(x, params):
    """Pure-JAX reference (conv + eval-mode BN + ReLU, channel concat)."""
    outs = []
    for i, k in enumerate(KERNEL_SIZES):
        w, b = params["w"][i], params["b"][i]
        gamma, beta = params["gamma"][i], params["beta"][i]
        mean, var = params["mean"][i], params["var"][i]
        y = jax.lax.conv_general_dilated(
            x, w, window_strides=(1,), padding=[(k // 2, k // 2)],
            dimension_numbers=("NCH", "OIH", "NCH"))
        y = y + b[None, :, None]
        y = gamma[None, :, None] * (y - mean[None, :, None]) \
            / jnp.sqrt(var[None, :, None] + BN_EPS) + beta[None, :, None]
        outs.append(jnp.maximum(y, 0.0))
    return jnp.concatenate(outs, axis=1)


def _init_params(key, in_channels, out_channels):
    """Deterministic synthetic parameter init (shapes from the module __init__)."""
    params = {"w": [], "b": [], "gamma": [], "beta": [], "mean": [], "var": []}
    for i, k in enumerate(KERNEL_SIZES):
        kw, kb, kg, kbe, km, kv = jax.random.split(jax.random.fold_in(key, i), 6)
        params["w"].append(
            0.1 * jax.random.normal(kw, (out_channels, in_channels, k), jnp.float32))
        params["b"].append(
            0.1 * jax.random.normal(kb, (out_channels,), jnp.float32))
        params["gamma"].append(
            1.0 + 0.1 * jax.random.normal(kg, (out_channels,), jnp.float32))
        params["beta"].append(
            0.1 * jax.random.normal(kbe, (out_channels,), jnp.float32))
        params["mean"].append(
            0.1 * jax.random.normal(km, (out_channels,), jnp.float32))
        params["var"].append(
            1.0 + 0.1 * jax.random.uniform(kv, (out_channels,), jnp.float32))
    return params


if __name__ == "__main__":
    key = jax.random.PRNGKey(0)
    kx, kp = jax.random.split(key)

    N, C_in, C_out, L = 2, 4, 8, 16
    x = jax.random.normal(kx, (N, C_in, L), jnp.float32)
    params = _init_params(kp, C_in, C_out)

    out = jax.block_until_ready(multi_scale_conv1d(x, params))
    ref = _reference(x, params)

    assert out.shape == (N, len(KERNEL_SIZES) * C_out, L)
    # bf16 operands feed the MXU (f32 accumulation), so compare with a
    # bf16-appropriate tolerance.
    err = jnp.max(jnp.abs(out - ref))
    assert jnp.allclose(out, ref, atol=5e-2, rtol=5e-2), f"max err {err}"

    print("KERNEL_OK")
</pallas_src>

<mosaic_0001>
module attributes {stable_mosaic.version = 11 : i64} {
  func.func @_ms_conv_kernel(%arg0: i32, %arg1: memref<2x4x16xf32, #tpu.memory_space<vmem>>, %arg2: memref<24x28xbf16, #tpu.memory_space<vmem>>, %arg3: memref<24x1xf32, #tpu.memory_space<vmem>>, %arg4: memref<2x24x16xf32, #tpu.memory_space<vmem>>, %arg5: memref<2x4x22xbf16, #tpu.memory_space<vmem>>) attributes {dimension_semantics = [#tpu.dimension_semantics<parallel>], iteration_bounds = array<i64: 1>, scalar_prefetch = 0 : i64, scratch_operands = 1 : i64, tpu.core_type = #tpu.core_type<tc>, window_params = [{transform_indices = @transform_0, window_bounds = array<i64: 2, 4, 16>}, {pipeline_mode = #tpu.pipeline_mode<synchronous>, transform_indices = @transform_1, window_bounds = array<i64: 24, 28>}, {pipeline_mode = #tpu.pipeline_mode<synchronous>, transform_indices = @transform_2, window_bounds = array<i64: 24, 1>}, {transform_indices = @transform_3, window_bounds = array<i64: 2, 24, 16>}]} {
    %cst = arith.constant 0.000000e+00 : bf16
    %0 = vector.broadcast %cst : bf16 to vector<2x4x3xbf16>
    %c0 = arith.constant 0 : index
    %c0_0 = arith.constant 0 : index
    %c0_1 = arith.constant 0 : index
    %1 = vector.load %arg5[%c0, %c0_0, %c0_1] : memref<2x4x22xbf16, #tpu.memory_space<vmem>>, vector<2x4x3xbf16>
    tpu.vector_store %arg5[%c0, %c0_0, %c0_1], %0 {strides = array<i32>} : memref<2x4x22xbf16, #tpu.memory_space<vmem>>, vector<2x4x3xbf16>,
    %cst_2 = arith.constant 0.000000e+00 : bf16
    %2 = vector.broadcast %cst_2 : bf16 to vector<2x4x3xbf16>
    %c0_3 = arith.constant 0 : index
    %c0_4 = arith.constant 0 : index
    %c19 = arith.constant 19 : index
    %3 = vector.load %arg5[%c0_3, %c0_4, %c19] : memref<2x4x22xbf16, #tpu.memory_space<vmem>>, vector<2x4x3xbf16>
    tpu.vector_store %arg5[%c0_3, %c0_4, %c19], %2 {strides = array<i32>} : memref<2x4x22xbf16, #tpu.memory_space<vmem>>, vector<2x4x3xbf16>,
    %c0_5 = arith.constant 0 : index
    %c0_6 = arith.constant 0 : index
    %c0_7 = arith.constant 0 : index
    %4 = vector.load %arg1[%c0_5, %c0_6, %c0_7] : memref<2x4x16xf32, #tpu.memory_space<vmem>>, vector<2x4x16xf32>
    %5 = arith.truncf %4 : vector<2x4x16xf32> to vector<2x4x16xbf16>
    %c0_8 = arith.constant 0 : index
    %c0_9 = arith.constant 0 : index
    %c3 = arith.constant 3 : index
    %6 = vector.load %arg5[%c0_8, %c0_9, %c3] : memref<2x4x22xbf16, #tpu.memory_space<vmem>>, vector<2x4x16xbf16>
    tpu.vector_store %arg5[%c0_8, %c0_9, %c3], %5 {strides = array<i32>} : memref<2x4x22xbf16, #tpu.memory_space<vmem>>, vector<2x4x16xbf16>,
    %c0_10 = arith.constant 0 : index
    %c0_11 = arith.constant 0 : index
    %7 = vector.load %arg2[%c0_10, %c0_11] : memref<24x28xbf16, #tpu.memory_space<vmem>>, vector<24x28xbf16>
    %c0_12 = arith.constant 0 : index
    %c0_13 = arith.constant 0 : index
    %8 = vector.load %arg3[%c0_12, %c0_13] : memref<24x1xf32, #tpu.memory_space<vmem>>, vector<24x1xf32>
    %c0_14 = arith.constant 0 : index
    %c0_15 = arith.constant 0 : index
    %c0_16 = arith.constant 0 : index
    %9 = vector.load %arg5[%c0_14, %c0_15, %c0_16] : memref<2x4x22xbf16, #tpu.memory_space<vmem>>, vector<1x4x22xbf16>
    %10 = vector.shape_cast %9 : vector<1x4x22xbf16> to vector<4x22xbf16>
    %11 = vector.extract_strided_slice %10 {offsets = [0, 0], sizes = [4, 16], strides = [1, 1]} : vector<4x22xbf16> to vector<4x16xbf16>
    %12 = vector.extract_strided_slice %10 {offsets = [0, 1], sizes = [4, 16], strides = [1, 1]} : vector<4x22xbf16> to vector<4x16xbf16>
    %13 = vector.extract_strided_slice %10 {offsets = [0, 2], sizes = [4, 16], strides = [1, 1]} : vector<4x22xbf16> to vector<4x16xbf16>
    %14 = vector.extract_strided_slice %10 {offsets = [0, 3], sizes = [4, 16], strides = [1, 1]} : vector<4x22xbf16> to vector<4x16xbf16>
    %15 = vector.extract_strided_slice %10 {offsets = [0, 4], sizes = [4, 16], strides = [1, 1]} : vector<4x22xbf16> to vector<4x16xbf16>
    %16 = vector.extract_strided_slice %10 {offsets = [0, 5], sizes = [4, 16], strides = [1, 1]} : vector<4x22xbf16> to vector<4x16xbf16>
    %17 = vector.extract_strided_slice %10 {offsets = [0, 6], sizes = [4, 16], strides = [1, 1]} : vector<4x22xbf16> to vector<4x16xbf16>
    %18 = tpu.concatenate %11, %12, %13, %14, %15, %16, %17 in 0 : vector<4x16xbf16>, vector<4x16xbf16>, vector<4x16xbf16>, vector<4x16xbf16>, vector<4x16xbf16>, vector<4x16xbf16>, vector<4x16xbf16> -> vector<28x16xbf16>
    %cst_17 = arith.constant dense<0.000000e+00> : vector<24x16xf32>
    %19 = tpu.matmul %7, %18, %cst_17 {dimension_numbers = #tpu.dot_dimension_numbers<[1], [0], [0], [1], [0, 0, 1, 1], [], []>} : vector<24x28xbf16>, vector<28x16xbf16>, vector<24x16xf32> -> vector<24x16xf32>
    %20 = vector.broadcast %8 : vector<24x1xf32> to vector<24x16xf32>
    %21 = arith.addf %19, %20 : vector<24x16xf32>
    %cst_18 = arith.constant 0.000000e+00 : f32
    %22 = vector.broadcast %cst_18 : f32 to vector<24x16xf32>
    %23 = arith.maximumf %21, %22 : vector<24x16xf32>
    %c0_19 = arith.constant 0 : index
    %c0_20 = arith.constant 0 : index
    %c0_21 = arith.constant 0 : index
    %24 = vector.load %arg4[%c0_19, %c0_20, %c0_21] : memref<2x24x16xf32, #tpu.memory_space<vmem>>, vector<1x24x16xf32>
    %25 = vector.shape_cast %24 : vector<1x24x16xf32> to vector<24x16xf32>
    %26 = vector.shape_cast %23 : vector<24x16xf32> to vector<1x24x16xf32>
    tpu.vector_store %arg4[%c0_19, %c0_20, %c0_21], %26 {strides = array<i32>} : memref<2x24x16xf32, #tpu.memory_space<vmem>>, vector<1x24x16xf32>,
    %c1 = arith.constant 1 : index
    %c0_22 = arith.constant 0 : index
    %c0_23 = arith.constant 0 : index
    %27 = vector.load %arg5[%c1, %c0_22, %c0_23] : memref<2x4x22xbf16, #tpu.memory_space<vmem>>, vector<1x4x22xbf16>
    %28 = vector.shape_cast %27 : vector<1x4x22xbf16> to vector<4x22xbf16>
    %29 = vector.extract_strided_slice %28 {offsets = [0, 0], sizes = [4, 16], strides = [1, 1]} : vector<4x22xbf16> to vector<4x16xbf16>
    %30 = vector.extract_strided_slice %28 {offsets = [0, 1], sizes = [4, 16], strides = [1, 1]} : vector<4x22xbf16> to vector<4x16xbf16>
    %31 = vector.extract_strided_slice %28 {offsets = [0, 2], sizes = [4, 16], strides = [1, 1]} : vector<4x22xbf16> to vector<4x16xbf16>
    %32 = vector.extract_strided_slice %28 {offsets = [0, 3], sizes = [4, 16], strides = [1, 1]} : vector<4x22xbf16> to vector<4x16xbf16>
    %33 = vector.extract_strided_slice %28 {offsets = [0, 4], sizes = [4, 16], strides = [1, 1]} : vector<4x22xbf16> to vector<4x16xbf16>
    %34 = vector.extract_strided_slice %28 {offsets = [0, 5], sizes = [4, 16], strides = [1, 1]} : vector<4x22xbf16> to vector<4x16xbf16>
    %35 = vector.extract_strided_slice %28 {offsets = [0, 6], sizes = [4, 16], strides = [1, 1]} : vector<4x22xbf16> to vector<4x16xbf16>
    %36 = tpu.concatenate %29, %30, %31, %32, %33, %34, %35 in 0 : vector<4x16xbf16>, vector<4x16xbf16>, vector<4x16xbf16>, vector<4x16xbf16>, vector<4x16xbf16>, vector<4x16xbf16>, vector<4x16xbf16> -> vector<28x16xbf16>
    %cst_24 = arith.constant dense<0.000000e+00> : vector<24x16xf32>
    %37 = tpu.matmul %7, %36, %cst_24 {dimension_numbers = #tpu.dot_dimension_numbers<[1], [0], [0], [1], [0, 0, 1, 1], [], []>} : vector<24x28xbf16>, vector<28x16xbf16>, vector<24x16xf32> -> vector<24x16xf32>
    %38 = vector.broadcast %8 : vector<24x1xf32> to vector<24x16xf32>
    %39 = arith.addf %37, %38 : vector<24x16xf32>
    %cst_25 = arith.constant 0.000000e+00 : f32
    %40 = vector.broadcast %cst_25 : f32 to vector<24x16xf32>
    %41 = arith.maximumf %39, %40 : vector<24x16xf32>
    %c1_26 = arith.constant 1 : index
    %c0_27 = arith.constant 0 : index
    %c0_28 = arith.constant 0 : index
    %42 = vector.load %arg4[%c1_26, %c0_27, %c0_28] : memref<2x24x16xf32, #tpu.memory_space<vmem>>, vector<1x24x16xf32>
    %43 = vector.shape_cast %42 : vector<1x24x16xf32> to vector<24x16xf32>
    %44 = vector.shape_cast %41 : vector<24x16xf32> to vector<1x24x16xf32>
    tpu.vector_store %arg4[%c1_26, %c0_27, %c0_28], %44 {strides = array<i32>} : memref<2x24x16xf32, #tpu.memory_space<vmem>>, vector<1x24x16xf32>,
    return
  }
  func.func @transform_0(%arg0: i32) -> (i32, i32, i32) {
    %c0_i32 = arith.constant 0 : i32
    %c0_i32_0 = arith.constant 0 : i32
    %c0_i32_1 = arith.constant 0 : i32
    return %arg0, %c0_i32, %c0_i32_0 : i32, i32, i32
  }
  func.func @transform_1(%arg0: i32) -> (i32, i32) {
    %c0_i32 = arith.constant 0 : i32
    %c0_i32_0 = arith.constant 0 : i32
    %c0_i32_1 = arith.constant 0 : i32
    return %c0_i32, %c0_i32_0 : i32, i32
  }
  func.func @transform_2(%arg0: i32) -> (i32, i32) {
    %c0_i32 = arith.constant 0 : i32
    %c0_i32_0 = arith.constant 0 : i32
    %c0_i32_1 = arith.constant 0 : i32
    return %c0_i32, %c0_i32_0 : i32, i32
  }
  func.func @transform_3(%arg0: i32) -> (i32, i32, i32) {
    %c0_i32 = arith.constant 0 : i32
    %c0_i32_0 = arith.constant 0 : i32
    %c0_i32_1 = arith.constant 0 : i32
    return %arg0, %c0_i32, %c0_i32_0 : i32, i32, i32
  }
}

</mosaic_0001>

<llo_original>
// kernel: tpu_custom_call.1
$region0: #{tpu_custom_call.1}
  #allocation0 [shape = 'u32[]', space=smem, size = 0x4, offset = 0x4, fixed_abs, tag = 'smem constant byte address 0x4 - core index']
  #allocation1 [shape = 'u32[72,128]{1,0:T(1,128)}', space=vmem, size = 0x9000, scoped, tag = 'internal scratch']
  #allocation2 [shape = 'bf16[2,4,22]{2,1,0:T(4,128)(2,1)}', space=vmem, size = 0x800, scoped, tag = 'scratch operand']
  %s0 = inlined_call_operand.vmem [shape: f32[2,4,16], index: 0, kind: input, shape index: {}]
  %s1 = inlined_call_operand.vmem [shape: bf16[24,28], index: 1, kind: input, shape index: {}]
  %s2 = inlined_call_operand.vmem [shape: f32[24,1], index: 2, kind: input, shape index: {}]
  %s3 = inlined_call_operand.vmem [shape: f32[2,24,16], index: 3, kind: output, shape index: {}]
  %s4 = sld [smem:[#allocation0]]
  $region22: #{tpu_custom_call.1} parent=0
    _
  %s6 = ssub.s32 1, %s4
  %s7 = scalar_select 0, %s6, %s4
  // Predicated region
  $region2: #{tpu_custom_call.1} parent=0 // pred_check
    _
  $region3: #{tpu_custom_call.1} parent=0 // pred_check_branch
    %9 = sbr.rel (0) target = $region5
  $region4: #{tpu_custom_call.1} parent=0 // pred_region
    _
  $region5: #{tpu_custom_call.1} parent=0 // pred_fallthru
    _
  // Predicated region
  $region6: #{tpu_custom_call.1} parent=0 // pred_check
    _
  $region7: #{tpu_custom_call.1} parent=0 // pred_check_branch
    %11 = sbr.rel (0) target = $region9
  $region8: #{tpu_custom_call.1} parent=0 // pred_region
    _
  $region9: #{tpu_custom_call.1} parent=0 // pred_fallthru
    _
  // Predicated region
  $region10: #{tpu_custom_call.1} parent=0 // pred_check
    _
  $region11: #{tpu_custom_call.1} parent=0 // pred_check_branch
    %13 = sbr.rel (0) target = $region13
  $region12: #{tpu_custom_call.1} parent=0 // pred_region
    _
  $region13: #{tpu_custom_call.1} parent=0 // pred_fallthru
    _
  %vm15 = vcmask 17408
  %16 = vst.msk [vmem:[#allocation2] sm:$0x3] %vm15, 0
  %17 = vst.msk [vmem:[#allocation2 + $0x2] sm:$0x3] %vm15, 0
  %vm18 = vcmask 173208
  %19 = vst.msk [vmem:[#allocation2] sm:$0x3] %vm18, 0
  %20 = vst.msk [vmem:[#allocation2 + $0x2] sm:$0x3] %vm18, 0
  %v21 = vld [vmem:[%s0] sm:$0xf]
  %v22 = vld [vmem:[%s0 + $0x4] sm:$0xf]
  %v23 = vpack.c.bf16 %v21, %v21
  %v24 = vpack.c.bf16 %v22, %v22
  %v27 = vrot.slane %v23, 2
  %v28 = vrot.slane %v24, 2
  %vm29 = vcmask 1041408
  %v32 = vsel %vm29, %v23, %v27
  %v36 = vsel %vm29, %v24, %v28
  %38 = vrot.lane.b32.xlu0 %v32, 3
  %v39 = vpop.permute.xlu0 %38
  %40 = vrot.lane.b32.xlu0 %v36, 3
  %v41 = vpop.permute.xlu0 %40
  %vm44 = vcmask 148504
  %45 = vst.msk [vmem:[#allocation2] sm:$0x3] %vm44, %v39
  %46 = vst.msk [vmem:[#allocation2 + $0x2] sm:$0x3] %vm44, %v41
  %v47 = vld [vmem:[%s1] sm:$0xf]
  %v48 = vld [vmem:[%s1 + $0x4] sm:$0xf]
  %v49 = vld [vmem:[%s1 + $0x8] sm:$0xf]
  %v50 = vld [vmem:[%s2] sm:$0xff]
  %v51 = vld [vmem:[%s2 + $0x8] sm:$0xff]
  %v52 = vld [vmem:[%s2 + $0x10] sm:$0xff]
  %v53 = vld [vmem:[#allocation2] sm:$0x3]
  %s55 = scalar_lea.vmem [#allocation1], 1
  %56 = vst [vmem:[%s55] ss:$4 sm:$0xff] %v53
  %v57 = vld.sshfl [vmem:[#allocation1] sm:$0xff pattern:$0x73625140]
  %59 = vrot.lane.b32.xlu0 %v57, 127
  %v60 = vpop.permute.xlu0 %59
  %s61 = scalar_lea.vmem [#allocation1], 2
  %62 = vst [vmem:[%s61] ss:$4 sm:$0xff] %v53
  %v63 = vld.sshfl [vmem:[#allocation1] sm:$0xff pattern:$0x73625140]
  %65 = vrot.lane.b32.xlu0 %v63, 126
  %v66 = vpop.permute.xlu0 %65
  %s67 = scalar_lea.vmem [#allocation1], 3
  %68 = vst [vmem:[%s67] ss:$4 sm:$0xff] %v53
  %v69 = vld.sshfl [vmem:[#allocation1] sm:$0xff pattern:$0x73625140]
  %71 = vrot.lane.b32.xlu0 %v69, 125
  %v72 = vpop.permute.xlu0 %71
  %73 = vst [vmem:[#allocation1] ss:$4 sm:$0xff] %v53
  %v74 = vld.sshfl [vmem:[#allocation1] sm:$0xff pattern:$0x73625140]
  %76 = vrot.lane.b32.xlu0 %v74, 124
  %v77 = vpop.permute.xlu0 %76
  %s78 = scalar_lea.vmem [#allocation1], 1
  %79 = vst [vmem:[%s78] ss:$4 sm:$0xff] %v53
  %v80 = vld.sshfl [vmem:[#allocation1] sm:$0xff pattern:$0x73625140]
  %82 = vrot.lane.b32.xlu0 %v80, 123
  %v83 = vpop.permute.xlu0 %82
  %s84 = scalar_lea.vmem [#allocation1], 2
  %85 = vst [vmem:[%s84] ss:$4 sm:$0xff] %v53
  %v86 = vld.sshfl [vmem:[#allocation1] sm:$0xff pattern:$0x73625140]
  %88 = vrot.lane.b32.xlu0 %v86, 122
  %v89 = vpop.permute.xlu0 %88
  %v91 = vsel %vm29, %v53, %v60
  %vm92 = vcmask 1043456
  %v94 = vsel %vm92, %v91, %v66
  %vm95 = vcmask 1045504
  %v97 = vsel %vm95, %v94, %v72
  %v101 = vsel %vm29, %v77, %v83
  %v103 = vsel %vm92, %v101, %v89
  %105 = vset.pattern.permute.xlu0 0
  %106 = vperm.xlu0 %105, %v50
  %v107 = vpop.permute.xlu0 %106
  %110 = vset.pattern.permute.xlu0 0
  %111 = vperm.xlu0 %110, %v51
  %v112 = vpop.permute.xlu0 %111
  %115 = vset.pattern.permute.xlu0 0
  %116 = vperm.xlu0 %115, %v52
  %v117 = vpop.permute.xlu0 %116
  %v122 = vunpack.c.l.b16 %v47
  %v123 = vunpack.c.l.b16 %v48
  %v124 = vunpack.c.l.b16 %v49
  %v125 = vpack.c.b16 %v123, %v122
  %v126 = vpack.c.b16 %v124, %v124
  %vm127 = vcmask 228352
  %v129 = vsel %vm127, %v125, 0
  %v132 = vsel %vm127, %v126, 0
  %v134 = vsel %vm95, %v103, 0
  %136 = vmatpush.bf16.msra.mxu0 0
  %137 = vmatpush.bf16.msra.mxu0 0
  %138 = vmatpush.bf16.msra.mxu0 0
  %139 = vmatpush.bf16.msra.mxu0 0
  %140 = vmatpush.bf16.msra.mxu0 0
  %141 = vmatpush.bf16.msra.mxu0 0
  %142 = vmatpush.bf16.msra.mxu0 %v134
  %143 = vmatpush.bf16.msra.mxu0 %v97
  %144 = vmatmul.bf16.gmra.mxu0 %v129
  %v145 = vpop.f32.mrf.mxu0
  %v146 = vadd.f32 %v107, %v145
  %v147 = vpop.f32.mrf.mxu0
  %v148 = vadd.f32 %v112, %v147
  %149 = vmatmul.bf16.gmra.mxu0 %v132
  %v150 = vpop.f32.mrf.mxu0
  %v151 = vadd.f32 %v117, %v150
  %v152 = vpop.f32.mrf.mxu0
  %153 = vdwg.mxu0
  %v154 = vmax.f32 %v146, 0.0
  %v155 = vmax.f32 %v148, 0.0
  %v156 = vmax.f32 %v151, 0.0
  %vm157 = vcmask 130048
  %158 = vst.msk [vmem:[%s3] sm:$0xff] %vm157, %v154
  %159 = vst.msk [vmem:[%s3 + $0x8] sm:$0xff] %vm157, %v155
  %160 = vst.msk [vmem:[%s3 + $0x10] sm:$0xff] %vm157, %v156
  %s161 = scalar_lea.vmem [#allocation2], 2
  %v162 = vld [vmem:[%s161] sm:$0x3]
  %s164 = scalar_lea.vmem [#allocation1], 1
  %165 = vst [vmem:[%s164] ss:$4 sm:$0xff] %v162
  %v166 = vld.sshfl [vmem:[#allocation1] sm:$0xff pattern:$0x73625140]
  %168 = vrot.lane.b32.xlu0 %v166, 127
  %v169 = vpop.permute.xlu0 %168
  %s170 = scalar_lea.vmem [#allocation1], 2
  %171 = vst [vmem:[%s170] ss:$4 sm:$0xff] %v162
  %v172 = vld.sshfl [vmem:[#allocation1] sm:$0xff pattern:$0x73625140]
  %174 = vrot.lane.b32.xlu0 %v172, 126
  %v175 = vpop.permute.xlu0 %174
  %s176 = scalar_lea.vmem [#allocation1], 3
  %177 = vst [vmem:[%s176] ss:$4 sm:$0xff] %v162
  %v178 = vld.sshfl [vmem:[#allocation1] sm:$0xff pattern:$0x73625140]
  %180 = vrot.lane.b32.xlu0 %v178, 125
  %v181 = vpop.permute.xlu0 %180
  %182 = vst [vmem:[#allocation1] ss:$4 sm:$0xff] %v162
  %v183 = vld.sshfl [vmem:[#allocation1] sm:$0xff pattern:$0x73625140]
  %185 = vrot.lane.b32.xlu0 %v183, 124
  %v186 = vpop.permute.xlu0 %185
  %s187 = scalar_lea.vmem [#allocation1], 1
  %188 = vst [vmem:[%s187] ss:$4 sm:$0xff] %v162
  %v189 = vld.sshfl [vmem:[#allocation1] sm:$0xff pattern:$0x73625140]
  %191 = vrot.lane.b32.xlu0 %v189, 123
  %v192 = vpop.permute.xlu0 %191
  %s193 = scalar_lea.vmem [#allocation1], 2
  %194 = vst [vmem:[%s193] ss:$4 sm:$0xff] %v162
  %v195 = vld.sshfl [vmem:[#allocation1] sm:$0xff pattern:$0x73625140]
  %197 = vrot.lane.b32.xlu0 %v195, 122
  %v198 = vpop.permute.xlu0 %197
  %v200 = vsel %vm29, %v162, %v169
  %v202 = vsel %vm92, %v200, %v175
  %v204 = vsel %vm95, %v202, %v181
  %v208 = vsel %vm29, %v186, %v192
  %v210 = vsel %vm92, %v208, %v198
  %v211 = vsel %vm95, %v210, 0
  %213 = vmatpush.bf16.msra.mxu0 0
  %214 = vmatpush.bf16.msra.mxu0 0
  %215 = vmatpush.bf16.msra.mxu0 0
  %216 = vmatpush.bf16.msra.mxu0 0
  %217 = vmatpush.bf16.msra.mxu0 0
  %218 = vmatpush.bf16.msra.mxu0 0
  %219 = vmatpush.bf16.msra.mxu0 %v211
  %220 = vmatpush.bf16.msra.mxu0 %v204
  %221 = vmatmul.bf16.gmra.mxu0 %v129
  %v222 = vpop.f32.mrf.mxu0
  %v223 = vadd.f32 %v107, %v222
  %v224 = vpop.f32.mrf.mxu0
  %v225 = vadd.f32 %v112, %v224
  %226 = vmatmul.bf16.gmra.mxu0 %v132
  %v227 = vpop.f32.mrf.mxu0
  %v228 = vadd.f32 %v117, %v227
  %v229 = vpop.f32.mrf.mxu0
  %230 = vdwg.mxu0
  %v231 = vmax.f32 %v223, 0.0
  %v232 = vmax.f32 %v225, 0.0
  %v233 = vmax.f32 %v228, 0.0
  %s234 = scalar_lea.vmem %s3, 24
  %235 = vst.msk [vmem:[%s234] sm:$0xff] %vm157, %v231
  %236 = vst.msk [vmem:[%s234 + $0x8] sm:$0xff] %vm157, %v232
  %237 = vst.msk [vmem:[%s234 + $0x10] sm:$0xff] %vm157, %v233
  // Predicated region
  $region14: #{tpu_custom_call.1} parent=0 // pred_check
    _
  $region15: #{tpu_custom_call.1} parent=0 // pred_check_branch
    %239 = sbr.rel (0) target = $region17
  $region16: #{tpu_custom_call.1} parent=0 // pred_region
    _
  $region17: #{tpu_custom_call.1} parent=0 // pred_fallthru
    _
  // Predicated region
  $region18: #{tpu_custom_call.1} parent=0 // pred_check
    _
  $region19: #{tpu_custom_call.1} parent=0 // pred_check_branch
    %241 = sbr.rel (0) target = $region21
  $region20: #{tpu_custom_call.1} parent=0 // pred_region
    _
  $region21: #{tpu_custom_call.1} parent=0 // pred_fallthru
    _

</llo_original>
